<compile_context>
chip_gen: v7x
topology: tpu7x:2x2x1
jax: 0.10.0
libtpu: 0.0.40
codegen_flags: <defaults>
</compile_context>

<pallas_src>
import functools

import jax
import jax.numpy as jnp
from jax import lax
from jax.experimental import pallas as pl
from jax.experimental.pallas import tpu as pltpu

LANE = 128      # TPU lane width (last dim of a vreg)
SUBLANE = 8     # f32 sublanes per vreg


def _focal_loss_kernel(pt_ref, tgt_ref, out_ref, *, gamma_int, gamma, alpha,
                       row_tile, total_n, needs_mask):
    """Elementwise focal loss on one (row_tile, LANE) tile + vector partial sum."""
    pt = pt_ref[...]
    t = tgt_ref[...]

    # Integer gamma -> explicit multiplies; avoids exp(gamma*log(x)) on the EUP.
    if gamma_int is not None:
        one_m_pt_g = lax.integer_pow(1.0 - pt, gamma_int)
        pt_g = lax.integer_pow(pt, gamma_int)
    else:
        one_m_pt_g = (1.0 - pt) ** gamma
        pt_g = pt ** gamma

    loss = (-alpha * one_m_pt_g * t * jnp.log(pt)
            - (1.0 - alpha) * pt_g * (1.0 - t) * jnp.log(1.0 - pt))

    if needs_mask:
        # Padding lives at the flat tail: zero out elements with flat index >= N.
        i = pl.program_id(0)
        row = lax.broadcasted_iota(jnp.int32, loss.shape, 0) + i * row_tile
        lane = lax.broadcasted_iota(jnp.int32, loss.shape, 1)
        flat_idx = row * LANE + lane
        loss = jnp.where(flat_idx < total_n, loss, 0.0)

    # Fold rows into a single (8, LANE) slab: just a chain of vreg adds (VPU),
    # no per-step scalar/XLU reduction and no carried accumulator.
    out_ref[...] = loss.reshape(row_tile // SUBLANE, SUBLANE, LANE).sum(axis=0)


def bce_focal_loss(pt, target, *, gamma=2, alpha=0.8,
                   reduction="elementwise_mean", row_tile=1024):
    """Pallas TPU implementation of BCEFocalLoss.forward (mean / sum reduction)."""
    assert pt.shape == target.shape
    if reduction not in ("elementwise_mean", "sum"):
        # TODO(synk): reduction='none' (elementwise output) not implemented.
        raise NotImplementedError(f"reduction={reduction!r} not supported")

    total_n = int(pt.size)

    pt_flat = pt.reshape(-1).astype(jnp.float32)
    tg_flat = target.reshape(-1).astype(jnp.float32)

    # Lane-dense (rows, 128) layout; pick an 8-aligned row tile no larger than
    # needed for small inputs, pad the flat tail, mask padding in-kernel.
    rows_min = -(-total_n // LANE)
    rt = min(int(row_tile), -(-rows_min // SUBLANE) * SUBLANE)
    rt = max(SUBLANE, (rt // SUBLANE) * SUBLANE)
    num_blocks = -(-rows_min // rt)
    rows_padded = num_blocks * rt
    pad = rows_padded * LANE - total_n
    needs_mask = pad > 0
    if pad:
        # pt padded with 0.5 so both logs stay finite; masked out in-kernel.
        pt_flat = jnp.concatenate([pt_flat, jnp.full((pad,), 0.5, jnp.float32)])
        tg_flat = jnp.concatenate([tg_flat, jnp.zeros((pad,), jnp.float32)])

    pt2d = pt_flat.reshape(rows_padded, LANE)
    tg2d = tg_flat.reshape(rows_padded, LANE)

    g_f = float(gamma)
    gamma_int = int(round(g_f)) if g_f == round(g_f) else None

    kernel = functools.partial(
        _focal_loss_kernel,
        gamma_int=gamma_int, gamma=g_f, alpha=float(alpha),
        row_tile=rt, total_n=total_n, needs_mask=needs_mask)

    # VMEM budget: 2 inputs x 2 pipeline buffers x block + output block.
    block_bytes = rt * LANE * 4
    vmem_needed = 2 * 2 * block_bytes + 2 * SUBLANE * LANE * 4
    vmem_limit = None
    if vmem_needed > 12 * 1024 * 1024:   # only raise when beyond conservative default
        vmem_limit = min(int(vmem_needed * 3 // 2), 64 * 1024 * 1024)

    partials = pl.pallas_call(
        kernel,
        out_shape=jax.ShapeDtypeStruct((num_blocks * SUBLANE, LANE), jnp.float32),
        grid_spec=pltpu.PrefetchScalarGridSpec(
            num_scalar_prefetch=0,
            grid=(num_blocks,),
            in_specs=[
                pl.BlockSpec((rt, LANE), lambda i: (i, 0)),
                pl.BlockSpec((rt, LANE), lambda i: (i, 0)),
            ],
            out_specs=pl.BlockSpec((SUBLANE, LANE), lambda i: (i, 0)),
        ),
        compiler_params=pltpu.CompilerParams(
            dimension_semantics=("parallel",),   # no carried state -> fully parallel
            vmem_limit_bytes=vmem_limit,
        ),
    )(pt2d, tg2d)

    total = jnp.sum(partials)            # tiny final reduce outside the kernel
    if reduction == "elementwise_mean":
        return total / jnp.float32(total_n)
    return total


def _reference(pt, target, gamma=2, alpha=0.8):
    pt = pt.astype(jnp.float32)
    t = target.astype(jnp.float32)
    loss = (-alpha * (1.0 - pt) ** gamma * t * jnp.log(pt)
            - (1.0 - alpha) * pt ** gamma * (1.0 - t) * jnp.log(1.0 - pt))
    return jnp.mean(loss)


if __name__ == "__main__":
    key = jax.random.PRNGKey(0)
    k1, k2, k3, k4 = jax.random.split(key, 4)

    # Small NCHW-shaped inputs: predictions pt in (0,1), binary targets.
    B, C, H, W = 2, 4, 16, 16
    pt = jax.random.uniform(k1, (B, C, H, W), dtype=jnp.float32,
                            minval=1e-3, maxval=1.0 - 1e-3)
    target = jax.random.bernoulli(k2, p=0.5, shape=(B, C, H, W)).astype(jnp.float32)

    loss = jax.block_until_ready(bce_focal_loss(pt, target, gamma=2, alpha=0.8))
    ref = _reference(pt, target)
    assert jnp.allclose(loss, ref, rtol=1e-5, atol=1e-6), (loss, ref)

    # Multi-block path (row_tile smaller than rows) + 'sum' reduction.
    loss_s = jax.block_until_ready(
        bce_focal_loss(pt, target, gamma=2, alpha=0.8, reduction="sum", row_tile=8))
    ref_s = ref * pt.size
    assert jnp.allclose(loss_s, ref_s, rtol=1e-5, atol=1e-4), (loss_s, ref_s)

    # Element count NOT a multiple of 128 -> exercises tail padding + in-kernel mask.
    pt2 = jax.random.uniform(k3, (3, 5, 7, 11), dtype=jnp.float32,
                             minval=1e-3, maxval=1.0 - 1e-3)
    tg2 = jax.random.bernoulli(k4, p=0.5, shape=(3, 5, 7, 11)).astype(jnp.float32)
    loss2 = jax.block_until_ready(bce_focal_loss(pt2, tg2, gamma=2, alpha=0.8))
    ref2 = _reference(pt2, tg2)
    assert jnp.allclose(loss2, ref2, rtol=1e-5, atol=1e-6), (loss2, ref2)

    print("KERNEL_OK")
</pallas_src>

<mosaic_0001>
module attributes {stable_mosaic.version = 11 : i64} {
  func.func @_focal_loss_kernel(%arg0: i32, %arg1: memref<16x128xf32, #tpu.memory_space<vmem>>, %arg2: memref<16x128xf32, #tpu.memory_space<vmem>>, %arg3: memref<8x128xf32, #tpu.memory_space<vmem>>) attributes {dimension_semantics = [#tpu.dimension_semantics<parallel>], iteration_bounds = array<i64: 1>, scalar_prefetch = 0 : i64, scratch_operands = 0 : i64, tpu.core_type = #tpu.core_type<tc>, window_params = [{transform_indices = @transform_0, window_bounds = array<i64: 16, 128>}, {transform_indices = @transform_1, window_bounds = array<i64: 16, 128>}, {transform_indices = @transform_2, window_bounds = array<i64: 8, 128>}]} {
    %c0 = arith.constant 0 : index
    %c0_0 = arith.constant 0 : index
    %0 = vector.load %arg1[%c0, %c0_0] : memref<16x128xf32, #tpu.memory_space<vmem>>, vector<16x128xf32>
    %c0_1 = arith.constant 0 : index
    %c0_2 = arith.constant 0 : index
    %1 = vector.load %arg2[%c0_1, %c0_2] : memref<16x128xf32, #tpu.memory_space<vmem>>, vector<16x128xf32>
    %cst = arith.constant 1.000000e+00 : f32
    %2 = vector.broadcast %cst : f32 to vector<16x128xf32>
    %3 = arith.subf %2, %0 : vector<16x128xf32>
    %4 = arith.mulf %3, %3 : vector<16x128xf32>
    %5 = arith.mulf %0, %0 : vector<16x128xf32>
    %cst_3 = arith.constant -8.000000e-01 : f32
    %6 = vector.broadcast %cst_3 : f32 to vector<16x128xf32>
    %7 = arith.mulf %6, %4 : vector<16x128xf32>
    %8 = arith.mulf %7, %1 : vector<16x128xf32>
    %9 = math.log %0 : vector<16x128xf32>
    %10 = arith.mulf %8, %9 : vector<16x128xf32>
    %cst_4 = arith.constant 2.000000e-01 : f32
    %11 = vector.broadcast %cst_4 : f32 to vector<16x128xf32>
    %12 = arith.mulf %11, %5 : vector<16x128xf32>
    %cst_5 = arith.constant 1.000000e+00 : f32
    %13 = vector.broadcast %cst_5 : f32 to vector<16x128xf32>
    %14 = arith.subf %13, %1 : vector<16x128xf32>
    %15 = arith.mulf %12, %14 : vector<16x128xf32>
    %cst_6 = arith.constant 1.000000e+00 : f32
    %16 = vector.broadcast %cst_6 : f32 to vector<16x128xf32>
    %17 = arith.subf %16, %0 : vector<16x128xf32>
    %18 = math.log %17 : vector<16x128xf32>
    %19 = arith.mulf %15, %18 : vector<16x128xf32>
    %20 = arith.subf %10, %19 : vector<16x128xf32>
    %21 = vector.shape_cast %20 : vector<16x128xf32> to vector<2x8x128xf32>
    %cst_7 = arith.constant dense<0.000000e+00> : vector<8x128xf32>
    %22 = vector.multi_reduction <add>, %21, %cst_7 [0] : vector<2x8x128xf32> to vector<8x128xf32>
    %c0_8 = arith.constant 0 : index
    %c0_9 = arith.constant 0 : index
    %23 = vector.load %arg3[%c0_8, %c0_9] : memref<8x128xf32, #tpu.memory_space<vmem>>, vector<8x128xf32>
    tpu.vector_store %arg3[%c0_8, %c0_9], %22 {strides = array<i32>} : memref<8x128xf32, #tpu.memory_space<vmem>>, vector<8x128xf32>,
    return
  }
  func.func @transform_0(%arg0: i32) -> (i32, i32) {
    %c0_i32 = arith.constant 0 : i32
    %c0_i32_0 = arith.constant 0 : i32
    return %arg0, %c0_i32 : i32, i32
  }
  func.func @transform_1(%arg0: i32) -> (i32, i32) {
    %c0_i32 = arith.constant 0 : i32
    %c0_i32_0 = arith.constant 0 : i32
    return %arg0, %c0_i32 : i32, i32
  }
  func.func @transform_2(%arg0: i32) -> (i32, i32) {
    %c0_i32 = arith.constant 0 : i32
    %c0_i32_0 = arith.constant 0 : i32
    return %arg0, %c0_i32 : i32, i32
  }
}

</mosaic_0001>

<llo_original>
// kernel: tpu_custom_call.1
$region0: #{tpu_custom_call.1}
  #allocation0 [shape = 'u32[]', space=smem, size = 0x4, offset = 0x4, fixed_abs, tag = 'smem constant byte address 0x4 - core index']
  #allocation1 [shape = 'u32[144,128]{1,0:T(1,128)}', space=vmem, size = 0x12000, scoped, tag = 'internal scratch']
  %s0 = inlined_call_operand.hbm [shape: f32[16,128], index: 0, kind: input, shape index: {}]
  %s1 = inlined_call_operand.hbm [shape: f32[16,128], index: 1, kind: input, shape index: {}]
  %s2 = inlined_call_operand.hbm [shape: f32[8,128], index: 2, kind: output, shape index: {}]
  %s3 = sld [smem:[#allocation0]]
  $region26: #{tpu_custom_call.1} parent=0
    _
  %s5 = ssub.s32 1, %s3
  %s6 = scalar_select 0, %s5, %s3
  $region1: #{tpu_custom_call.1} parent=0
    #allocation2 [shape = 'u8[8192]{0}', space=vmem, size = 0x2000, scoped, tag = 'input window, operand 0, single buffered']
    #allocation3 [shape = 's32[1]{0}', space=sflag, size = 0x4, scoped, tag = 'scoped memory for tpu_custom_call.1']
    #allocation4 [shape = 's32[1]{0}', space=sflag, size = 0x4, scoped, tag = 'scoped memory for tpu_custom_call.1']
    #allocation5 [shape = 'u8[8192]{0}', space=vmem, size = 0x2000, scoped, tag = 'input window, operand 1, single buffered']
    #allocation6 [shape = 's32[1]{0}', space=sflag, size = 0x4, scoped, tag = 'scoped memory for tpu_custom_call.1']
    #allocation7 [shape = 'u8[4096]{0}', space=vmem, size = 0x1000, scoped, tag = 'output window, operand 0, single buffered']
    %7 = vsyncpa [#allocation3], 0
    %8 = vsyncpa [#allocation6], 0
    %9 = vsyncpa [#allocation4], 0
    // Predicated region
    $region2: #{tpu_custom_call.1} parent=1 // pred_check
      _
    $region3: #{tpu_custom_call.1} parent=1 // pred_check_branch
      %11 = sbr.rel (0) target = $region5
    $region4: #{tpu_custom_call.1} parent=1 // pred_region
      %s13 = ssub.s32 256, 256
      %14 = vsyncadd [#allocation3], %s13
      %s15 = sshll.u32 [#allocation2], 4
      %s16 = int_to_ptr.vmem [resolvable:$true] %s15
      %21 = dma.hbm_to_vmem [thread:$0]  %s0, 256, %s16, [#allocation3], 128, 128, 8
    $region5: #{tpu_custom_call.1} parent=1 // pred_fallthru
      _
    // Predicated region
    $region6: #{tpu_custom_call.1} parent=1 // pred_check
      _
    $region7: #{tpu_custom_call.1} parent=1 // pred_check_branch
      %23 = sbr.rel (0) target = $region9
    $region8: #{tpu_custom_call.1} parent=1 // pred_region
      %s25 = ssub.s32 256, 256
      %26 = vsyncadd [#allocation6], %s25
      %s27 = sshll.u32 [#allocation5], 4
      %s28 = int_to_ptr.vmem [resolvable:$true] %s27
      %33 = dma.hbm_to_vmem [thread:$0]  %s1, 256, %s28, [#allocation6], 128, 128, 8
    $region9: #{tpu_custom_call.1} parent=1 // pred_fallthru
      _
    // Predicated region
    $region10: #{tpu_custom_call.1} parent=1 // pred_check
      _
    $region11: #{tpu_custom_call.1} parent=1 // pred_check_branch
      %35 = sbr.rel (0) target = $region13
    $region12: #{tpu_custom_call.1} parent=1 // pred_region
      %36 = dma.done [#allocation3], 256
    $region13: #{tpu_custom_call.1} parent=1 // pred_fallthru
      _
    // Predicated region
    $region14: #{tpu_custom_call.1} parent=1 // pred_check
      _
    $region15: #{tpu_custom_call.1} parent=1 // pred_check_branch
      %38 = sbr.rel (0) target = $region17
    $region16: #{tpu_custom_call.1} parent=1 // pred_region
      %39 = dma.done [#allocation6], 256
    $region17: #{tpu_custom_call.1} parent=1 // pred_fallthru
      _
    %v40 = vld [vmem:[#allocation2] sm:$0xff]
    %v41 = vld [vmem:[#allocation2 + $0x8] sm:$0xff]
    %v42 = vld [vmem:[#allocation5] sm:$0xff]
    %v43 = vld [vmem:[#allocation5 + $0x8] sm:$0xff]
    %v44 = vsub.f32 1.0, %v40
    %v45 = vsub.f32 1.0, %v41
    %v46 = vmul.f32 %v44, %v44
    %v47 = vmul.f32 %v45, %v45
    %v48 = vmul.f32 %v40, %v40
    %v49 = vmul.f32 %v41, %v41
    %v50 = vmul.f32 %v46, -0.8
    %v51 = vmul.f32 %v47, -0.8
    %v52 = vmul.f32 %v50, %v42
    %v53 = vmul.f32 %v51, %v43
    %v54 = vlog2.pop %v40
    %v55 = vmul.f32 %v54, 0.6931472
    %v56 = vlog2.pop %v41
    %v57 = vmul.f32 %v56, 0.6931472
    %v58 = vmul.f32 %v52, %v55
    %v59 = vmul.f32 %v53, %v57
    %v60 = vmul.f32 %v48, 0.2
    %v61 = vmul.f32 %v49, 0.2
    %v62 = vsub.f32 1.0, %v42
    %v63 = vsub.f32 1.0, %v43
    %v64 = vmul.f32 %v60, %v62
    %v65 = vmul.f32 %v61, %v63
    %v66 = vlog2.pop %v44
    %v67 = vmul.f32 %v66, 0.6931472
    %v68 = vlog2.pop %v45
    %v69 = vmul.f32 %v68, 0.6931472
    %v70 = vmul.f32 %v64, %v67
    %v71 = vmul.f32 %v65, %v69
    %v72 = vsub.f32 %v58, %v70
    %v73 = vsub.f32 %v59, %v71
    %v74 = vadd.f32 %v72, %v73
    %75 = vst [vmem:[#allocation7] sm:$0xff] %v74
    // Predicated region
    $region18: #{tpu_custom_call.1} parent=1 // pred_check
      _
    $region19: #{tpu_custom_call.1} parent=1 // pred_check_branch
      %77 = sbr.rel (0) target = $region21
    $region20: #{tpu_custom_call.1} parent=1 // pred_region
      %s79 = ssub.s32 128, 128
      %80 = vsyncadd [#allocation4], %s79
      %s82 = sshll.u32 [#allocation7], 4
      %s83 = int_to_ptr.vmem [resolvable:$true] %s82
      %85 = dma.vmem_to_hbm [thread:$0]  %s83, 128, %s2, [#allocation4]
    $region21: #{tpu_custom_call.1} parent=1 // pred_fallthru
      _
    // Predicated region
    $region22: #{tpu_custom_call.1} parent=1 // pred_check
      _
    $region23: #{tpu_custom_call.1} parent=1 // pred_check_branch
      %87 = sbr.rel (0) target = $region25
    $region24: #{tpu_custom_call.1} parent=1 // pred_region
      %88 = dma.done [#allocation4], 128
    $region25: #{tpu_custom_call.1} parent=1 // pred_fallthru
      _
    %89 = vsyncpa [#allocation3], 1
    %90 = vsyncpa [#allocation6], 1
    %91 = vsyncpa [#allocation4], 1

</llo_original>
